<compile_context>
chip_gen: v6e
topology: v6e:2x2x1
jax: 0.10.0
libtpu: 0.0.40
codegen_flags: <defaults>
</compile_context>

<pallas_src>
import jax
import jax.numpy as jnp
from jax.experimental import pallas as pl
from jax.experimental.pallas import tpu as pltpu

_LANE = 128
_SUBLANE = 8


def _round_up(n, m):
    return (n + m - 1) // m * m


def dqn_kernel(x_ref,
               w1_ref, b1_ref,
               w2_ref, b2_ref,
               w3_ref, b3_ref,
               w4_ref, b4_ref,
               w5_ref, b5_ref,
               o_ref):
    # 4 x (Linear + tanh) + final Linear. bf16 operands on the MXU with f32
    # accumulation; bias add + tanh in f32, recast to bf16 for the next dot.
    h = x_ref[...]                                           # bf16 [TB, F_pad]
    for w_ref, b_ref in ((w1_ref, b1_ref), (w2_ref, b2_ref),
                         (w3_ref, b3_ref), (w4_ref, b4_ref)):
        z = jnp.dot(h, w_ref[...], preferred_element_type=jnp.float32)
        h = jnp.tanh(z + b_ref[...]).astype(jnp.bfloat16)
    # Final layer: raw Q-values, lane-dense f32 [TB, 128] (column 0 is real).
    o_ref[...] = (jnp.dot(h, w5_ref[...], preferred_element_type=jnp.float32)
                  + b5_ref[...])


def init_params(key, in_features):
    """nn.Linear-style U(-1/sqrt(fan_in), 1/sqrt(fan_in)); W stored [in, out]."""
    dims = [in_features, 256, 128, 64, 32, 1]
    params = []
    for i in range(5):
        fan_in, fan_out = dims[i], dims[i + 1]
        key, kw, kb = jax.random.split(key, 3)
        bound = 1.0 / jnp.sqrt(jnp.float32(fan_in))
        w = jax.random.uniform(kw, (fan_in, fan_out), jnp.float32,
                               minval=-bound, maxval=bound)
        b = jax.random.uniform(kb, (1, fan_out), jnp.float32,
                               minval=-bound, maxval=bound)
        params.append((w, b))
    return params


def prepare_params(params):
    """Zero-pad every layer to sublane/lane aligned widths; cast W to bf16.

    Padded output columns get zero weights + zero bias -> after tanh they stay
    exactly 0, and padded input rows of the next layer are zero, so results
    are bit-for-bit equivalent to the unpadded math (up to bf16 rounding of
    the real weights, which we apply intentionally for MXU throughput).
    """
    dims = [params[0][0].shape[0]] + [w.shape[1] for w, _ in params]
    pdims = [_round_up(dims[0], _SUBLANE)] + [_round_up(d, _LANE) for d in dims[1:]]
    packed = []
    for i, (w, b) in enumerate(params):
        in_p, out_p = pdims[i], pdims[i + 1]
        wp = jnp.zeros((in_p, out_p), jnp.float32).at[:w.shape[0], :w.shape[1]].set(w)
        bp = jnp.zeros((1, out_p), jnp.float32).at[:, :b.shape[-1]].set(
            b.reshape(1, -1))
        packed.append((wp.astype(jnp.bfloat16), bp))
    return packed, pdims


def dqn_forward(x, packed_params, pdims, *, batch_tile=256):
    """Returns (module output = softmax [B,1], raw Q-values [B,1])."""
    B, F = x.shape
    f_pad, out_pad = pdims[0], pdims[-1]

    # Batch tile: whole (8-rounded) batch if small, else 256-row grid blocks.
    # 256 rows keeps f32 activations (<256x256) per buffer well under the
    # v7x 32 MiB scoped-VMEM budget even with double-buffering.
    tb = batch_tile if B > batch_tile else _round_up(max(B, 1), _SUBLANE)
    b_pad = _round_up(B, tb)
    n_blocks = b_pad // tb

    xp = jnp.zeros((b_pad, f_pad), jnp.bfloat16).at[:B, :F].set(
        x.astype(jnp.bfloat16))

    flat = []
    for w, b in packed_params:
        flat.extend([w, b])

    # x / out are tiled over the batch grid (auto-pipelined DMA); weights and
    # biases use a constant index_map so they stay VMEM-resident across steps.
    x_spec = pl.BlockSpec((tb, f_pad), lambda i: (i, 0))
    w_specs = [pl.BlockSpec(a.shape, lambda i: (0, 0)) for a in flat]
    out_spec = pl.BlockSpec((tb, out_pad), lambda i: (i, 0))

    flops = 2 * b_pad * sum(pdims[i] * pdims[i + 1] for i in range(5))
    transcendentals = b_pad * sum(pdims[1:5])          # tanh per hidden unit
    bytes_accessed = (xp.size * xp.dtype.itemsize
                      + sum(a.size * a.dtype.itemsize for a in flat)
                      + b_pad * out_pad * 4)

    logits_pad = pl.pallas_call(
        dqn_kernel,
        out_shape=jax.ShapeDtypeStruct((b_pad, out_pad), jnp.float32),
        grid=(n_blocks,),
        in_specs=[x_spec] + w_specs,
        out_specs=out_spec,
        compiler_params=pltpu.CompilerParams(
            dimension_semantics=("parallel",)),
        cost_estimate=pl.CostEstimate(
            flops=flops,
            transcendentals=transcendentals,
            bytes_accessed=bytes_accessed),
    )(xp, *flat)

    q_values = logits_pad[:B, :1]                      # real column 0 only
    # F.softmax with implicit dim -> dim=1; width-1 axis => identically 1.0.
    # Applied in the wrapper (trivial op) so the kernel carries useful logits.
    probs = jax.nn.softmax(q_values, axis=1)
    return probs, q_values


def reference_forward(x, params):
    """Pure-JAX f32 reference matching the PyTorch module."""
    h = x
    for i, (w, b) in enumerate(params):
        h = h @ w + b
        if i < 4:
            h = jnp.tanh(h)
    return jax.nn.softmax(h, axis=1), h


if __name__ == "__main__":
    key = jax.random.PRNGKey(0)
    k_x, k_p = jax.random.split(key)

    batch, in_features = 8, 4        # CartPole-style observation
    x = jax.random.normal(k_x, (batch, in_features), jnp.float32)
    params = init_params(k_p, in_features)
    packed, pdims = prepare_params(params)

    probs, q_values = dqn_forward(x, packed, pdims)
    probs = jax.block_until_ready(probs)
    q_values = jax.block_until_ready(q_values)

    ref_probs, ref_q = reference_forward(x, params)

    assert probs.shape == (batch, 1)
    # Module semantics: softmax over a width-1 action axis -> exactly 1.0.
    assert jnp.allclose(probs, ref_probs, atol=1e-6), (probs, ref_probs)
    # Q-values (bf16 MXU operands, f32 accumulation) vs. f32 reference.
    assert jnp.allclose(q_values, ref_q, atol=5e-2, rtol=5e-2), (q_values, ref_q)

    print("KERNEL_OK")
</pallas_src>

<mosaic_0001>
module attributes {stable_mosaic.version = 11 : i64} {
  func.func @dqn_kernel(%arg0: i32, %arg1: memref<8x8xbf16, #tpu.memory_space<vmem>>, %arg2: memref<8x256xbf16, #tpu.memory_space<vmem>>, %arg3: memref<1x256xf32, #tpu.memory_space<vmem>>, %arg4: memref<256x128xbf16, #tpu.memory_space<vmem>>, %arg5: memref<1x128xf32, #tpu.memory_space<vmem>>, %arg6: memref<128x128xbf16, #tpu.memory_space<vmem>>, %arg7: memref<1x128xf32, #tpu.memory_space<vmem>>, %arg8: memref<128x128xbf16, #tpu.memory_space<vmem>>, %arg9: memref<1x128xf32, #tpu.memory_space<vmem>>, %arg10: memref<128x128xbf16, #tpu.memory_space<vmem>>, %arg11: memref<1x128xf32, #tpu.memory_space<vmem>>, %arg12: memref<8x128xf32, #tpu.memory_space<vmem>>) attributes {dimension_semantics = [#tpu.dimension_semantics<parallel>], iteration_bounds = array<i64: 1>, scalar_prefetch = 0 : i64, scratch_operands = 0 : i64, tpu.core_type = #tpu.core_type<tc>, window_params = [{transform_indices = @transform_0, window_bounds = array<i64: 8, 8>}, {pipeline_mode = #tpu.pipeline_mode<synchronous>, transform_indices = @transform_1, window_bounds = array<i64: 8, 256>}, {pipeline_mode = #tpu.pipeline_mode<synchronous>, transform_indices = @transform_2, window_bounds = array<i64: 1, 256>}, {pipeline_mode = #tpu.pipeline_mode<synchronous>, transform_indices = @transform_3, window_bounds = array<i64: 256, 128>}, {pipeline_mode = #tpu.pipeline_mode<synchronous>, transform_indices = @transform_4, window_bounds = array<i64: 1, 128>}, {pipeline_mode = #tpu.pipeline_mode<synchronous>, transform_indices = @transform_5, window_bounds = array<i64: 128, 128>}, {pipeline_mode = #tpu.pipeline_mode<synchronous>, transform_indices = @transform_6, window_bounds = array<i64: 1, 128>}, {pipeline_mode = #tpu.pipeline_mode<synchronous>, transform_indices = @transform_7, window_bounds = array<i64: 128, 128>}, {pipeline_mode = #tpu.pipeline_mode<synchronous>, transform_indices = @transform_8, window_bounds = array<i64: 1, 128>}, {pipeline_mode = #tpu.pipeline_mode<synchronous>, transform_indices = @transform_9, window_bounds = array<i64: 128, 128>}, {pipeline_mode = #tpu.pipeline_mode<synchronous>, transform_indices = @transform_10, window_bounds = array<i64: 1, 128>}, {transform_indices = @transform_11, window_bounds = array<i64: 8, 128>}]} {
    %c0 = arith.constant 0 : index
    %c0_0 = arith.constant 0 : index
    %0 = vector.load %arg1[%c0, %c0_0] : memref<8x8xbf16, #tpu.memory_space<vmem>>, vector<8x8xbf16>
    %c0_1 = arith.constant 0 : index
    %c0_2 = arith.constant 0 : index
    %1 = vector.load %arg2[%c0_1, %c0_2] : memref<8x256xbf16, #tpu.memory_space<vmem>>, vector<8x256xbf16>
    %cst = arith.constant dense<0.000000e+00> : vector<8x256xf32>
    %2 = tpu.matmul %0, %1, %cst {dimension_numbers = #tpu.dot_dimension_numbers<[1], [0], [0], [1], [0, 0, 1, 1], [], []>} : vector<8x8xbf16>, vector<8x256xbf16>, vector<8x256xf32> -> vector<8x256xf32>
    %c0_3 = arith.constant 0 : index
    %c0_4 = arith.constant 0 : index
    %3 = vector.load %arg3[%c0_3, %c0_4] : memref<1x256xf32, #tpu.memory_space<vmem>>, vector<1x256xf32>
    %4 = vector.broadcast %3 : vector<1x256xf32> to vector<8x256xf32>
    %5 = arith.addf %2, %4 : vector<8x256xf32>
    %6 = math.tanh %5 : vector<8x256xf32>
    %7 = arith.truncf %6 : vector<8x256xf32> to vector<8x256xbf16>
    %c0_5 = arith.constant 0 : index
    %c0_6 = arith.constant 0 : index
    %8 = vector.load %arg4[%c0_5, %c0_6] : memref<256x128xbf16, #tpu.memory_space<vmem>>, vector<256x128xbf16>
    %cst_7 = arith.constant dense<0.000000e+00> : vector<8x128xf32>
    %9 = tpu.matmul %7, %8, %cst_7 {dimension_numbers = #tpu.dot_dimension_numbers<[1], [0], [0], [1], [0, 0, 1, 1], [], []>} : vector<8x256xbf16>, vector<256x128xbf16>, vector<8x128xf32> -> vector<8x128xf32>
    %c0_8 = arith.constant 0 : index
    %c0_9 = arith.constant 0 : index
    %10 = vector.load %arg5[%c0_8, %c0_9] : memref<1x128xf32, #tpu.memory_space<vmem>>, vector<1x128xf32>
    %11 = vector.broadcast %10 : vector<1x128xf32> to vector<8x128xf32>
    %12 = arith.addf %9, %11 : vector<8x128xf32>
    %13 = math.tanh %12 : vector<8x128xf32>
    %14 = arith.truncf %13 : vector<8x128xf32> to vector<8x128xbf16>
    %c0_10 = arith.constant 0 : index
    %c0_11 = arith.constant 0 : index
    %15 = vector.load %arg6[%c0_10, %c0_11] : memref<128x128xbf16, #tpu.memory_space<vmem>>, vector<128x128xbf16>
    %cst_12 = arith.constant dense<0.000000e+00> : vector<8x128xf32>
    %16 = tpu.matmul %14, %15, %cst_12 {dimension_numbers = #tpu.dot_dimension_numbers<[1], [0], [0], [1], [0, 0, 1, 1], [], []>} : vector<8x128xbf16>, vector<128x128xbf16>, vector<8x128xf32> -> vector<8x128xf32>
    %c0_13 = arith.constant 0 : index
    %c0_14 = arith.constant 0 : index
    %17 = vector.load %arg7[%c0_13, %c0_14] : memref<1x128xf32, #tpu.memory_space<vmem>>, vector<1x128xf32>
    %18 = vector.broadcast %17 : vector<1x128xf32> to vector<8x128xf32>
    %19 = arith.addf %16, %18 : vector<8x128xf32>
    %20 = math.tanh %19 : vector<8x128xf32>
    %21 = arith.truncf %20 : vector<8x128xf32> to vector<8x128xbf16>
    %c0_15 = arith.constant 0 : index
    %c0_16 = arith.constant 0 : index
    %22 = vector.load %arg8[%c0_15, %c0_16] : memref<128x128xbf16, #tpu.memory_space<vmem>>, vector<128x128xbf16>
    %cst_17 = arith.constant dense<0.000000e+00> : vector<8x128xf32>
    %23 = tpu.matmul %21, %22, %cst_17 {dimension_numbers = #tpu.dot_dimension_numbers<[1], [0], [0], [1], [0, 0, 1, 1], [], []>} : vector<8x128xbf16>, vector<128x128xbf16>, vector<8x128xf32> -> vector<8x128xf32>
    %c0_18 = arith.constant 0 : index
    %c0_19 = arith.constant 0 : index
    %24 = vector.load %arg9[%c0_18, %c0_19] : memref<1x128xf32, #tpu.memory_space<vmem>>, vector<1x128xf32>
    %25 = vector.broadcast %24 : vector<1x128xf32> to vector<8x128xf32>
    %26 = arith.addf %23, %25 : vector<8x128xf32>
    %27 = math.tanh %26 : vector<8x128xf32>
    %28 = arith.truncf %27 : vector<8x128xf32> to vector<8x128xbf16>
    %c0_20 = arith.constant 0 : index
    %c0_21 = arith.constant 0 : index
    %29 = vector.load %arg10[%c0_20, %c0_21] : memref<128x128xbf16, #tpu.memory_space<vmem>>, vector<128x128xbf16>
    %cst_22 = arith.constant dense<0.000000e+00> : vector<8x128xf32>
    %30 = tpu.matmul %28, %29, %cst_22 {dimension_numbers = #tpu.dot_dimension_numbers<[1], [0], [0], [1], [0, 0, 1, 1], [], []>} : vector<8x128xbf16>, vector<128x128xbf16>, vector<8x128xf32> -> vector<8x128xf32>
    %c0_23 = arith.constant 0 : index
    %c0_24 = arith.constant 0 : index
    %31 = vector.load %arg11[%c0_23, %c0_24] : memref<1x128xf32, #tpu.memory_space<vmem>>, vector<1x128xf32>
    %32 = vector.broadcast %31 : vector<1x128xf32> to vector<8x128xf32>
    %33 = arith.addf %30, %32 : vector<8x128xf32>
    %c0_25 = arith.constant 0 : index
    %c0_26 = arith.constant 0 : index
    %34 = vector.load %arg12[%c0_25, %c0_26] : memref<8x128xf32, #tpu.memory_space<vmem>>, vector<8x128xf32>
    tpu.vector_store %arg12[%c0_25, %c0_26], %33 {strides = array<i32>} : memref<8x128xf32, #tpu.memory_space<vmem>>, vector<8x128xf32>,
    return
  }
  func.func @transform_0(%arg0: i32) -> (i32, i32) {
    %c0_i32 = arith.constant 0 : i32
    %c0_i32_0 = arith.constant 0 : i32
    return %arg0, %c0_i32 : i32, i32
  }
  func.func @transform_1(%arg0: i32) -> (i32, i32) {
    %c0_i32 = arith.constant 0 : i32
    %c0_i32_0 = arith.constant 0 : i32
    %c0_i32_1 = arith.constant 0 : i32
    return %c0_i32, %c0_i32_0 : i32, i32
  }
  func.func @transform_2(%arg0: i32) -> (i32, i32) {
    %c0_i32 = arith.constant 0 : i32
    %c0_i32_0 = arith.constant 0 : i32
    %c0_i32_1 = arith.constant 0 : i32
    return %c0_i32, %c0_i32_0 : i32, i32
  }
  func.func @transform_3(%arg0: i32) -> (i32, i32) {
    %c0_i32 = arith.constant 0 : i32
    %c0_i32_0 = arith.constant 0 : i32
    %c0_i32_1 = arith.constant 0 : i32
    return %c0_i32, %c0_i32_0 : i32, i32
  }
  func.func @transform_4(%arg0: i32) -> (i32, i32) {
    %c0_i32 = arith.constant 0 : i32
    %c0_i32_0 = arith.constant 0 : i32
    %c0_i32_1 = arith.constant 0 : i32
    return %c0_i32, %c0_i32_0 : i32, i32
  }
  func.func @transform_5(%arg0: i32) -> (i32, i32) {
    %c0_i32 = arith.constant 0 : i32
    %c0_i32_0 = arith.constant 0 : i32
    %c0_i32_1 = arith.constant 0 : i32
    return %c0_i32, %c0_i32_0 : i32, i32
  }
  func.func @transform_6(%arg0: i32) -> (i32, i32) {
    %c0_i32 = arith.constant 0 : i32
    %c0_i32_0 = arith.constant 0 : i32
    %c0_i32_1 = arith.constant 0 : i32
    return %c0_i32, %c0_i32_0 : i32, i32
  }
  func.func @transform_7(%arg0: i32) -> (i32, i32) {
    %c0_i32 = arith.constant 0 : i32
    %c0_i32_0 = arith.constant 0 : i32
    %c0_i32_1 = arith.constant 0 : i32
    return %c0_i32, %c0_i32_0 : i32, i32
  }
  func.func @transform_8(%arg0: i32) -> (i32, i32) {
    %c0_i32 = arith.constant 0 : i32
    %c0_i32_0 = arith.constant 0 : i32
    %c0_i32_1 = arith.constant 0 : i32
    return %c0_i32, %c0_i32_0 : i32, i32
  }
  func.func @transform_9(%arg0: i32) -> (i32, i32) {
    %c0_i32 = arith.constant 0 : i32
    %c0_i32_0 = arith.constant 0 : i32
    %c0_i32_1 = arith.constant 0 : i32
    return %c0_i32, %c0_i32_0 : i32, i32
  }
  func.func @transform_10(%arg0: i32) -> (i32, i32) {
    %c0_i32 = arith.constant 0 : i32
    %c0_i32_0 = arith.constant 0 : i32
    %c0_i32_1 = arith.constant 0 : i32
    return %c0_i32, %c0_i32_0 : i32, i32
  }
  func.func @transform_11(%arg0: i32) -> (i32, i32) {
    %c0_i32 = arith.constant 0 : i32
    %c0_i32_0 = arith.constant 0 : i32
    return %arg0, %c0_i32 : i32, i32
  }
}

</mosaic_0001>

<llo_original>
// kernel: tpu_custom_call.1
$region0: #{tpu_custom_call.1}
  #allocation0 [shape = 'u32[]', space=smem, size = 0x4, offset = 0x4, fixed_abs, tag = 'smem constant byte address 0x4 - core index']
  #allocation1 [shape = 'u32[144,128]{1,0:T(1,128)}', space=vmem, size = 0x12000, scoped, tag = 'internal scratch']
  %s0 = inlined_call_operand.hbm [shape: bf16[8,8], index: 0, kind: input, shape index: {}]
  %s1 = inlined_call_operand.hbm [shape: bf16[8,256], index: 1, kind: input, shape index: {}]
  %s2 = inlined_call_operand.vmem [shape: f32[1,256], index: 2, kind: input, shape index: {}]
  %s3 = inlined_call_operand.hbm [shape: bf16[256,128], index: 3, kind: input, shape index: {}]
  %s4 = inlined_call_operand.vmem [shape: f32[1,128], index: 4, kind: input, shape index: {}]
  %s5 = inlined_call_operand.hbm [shape: bf16[128,128], index: 5, kind: input, shape index: {}]
  %s6 = inlined_call_operand.vmem [shape: f32[1,128], index: 6, kind: input, shape index: {}]
  %s7 = inlined_call_operand.hbm [shape: bf16[128,128], index: 7, kind: input, shape index: {}]
  %s8 = inlined_call_operand.vmem [shape: f32[1,128], index: 8, kind: input, shape index: {}]
  %s9 = inlined_call_operand.hbm [shape: bf16[128,128], index: 9, kind: input, shape index: {}]
  %s10 = inlined_call_operand.vmem [shape: f32[1,128], index: 10, kind: input, shape index: {}]
  %s11 = inlined_call_operand.hbm [shape: f32[8,128], index: 11, kind: output, shape index: {}]
  %s12 = sld [smem:[#allocation0]]
  $region78: #{tpu_custom_call.1} parent=0
    _
  %s14 = ssub.s32 1, %s12
  %s15 = scalar_select 0, %s14, %s12
  $region1: #{tpu_custom_call.1} parent=0
    #allocation2 [shape = 'u8[2048]{0}', space=vmem, size = 0x800, scoped, tag = 'input window, operand 0, single buffered']
    #allocation3 [shape = 's32[1]{0}', space=sflag, size = 0x4, scoped, tag = 'scoped memory for tpu_custom_call.1']
    #allocation4 [shape = 's32[1]{0}', space=sflag, size = 0x4, scoped, tag = 'scoped memory for tpu_custom_call.1']
    #allocation5 [shape = 'u8[4096]{0}', space=vmem, size = 0x1000, scoped, tag = 'input window, operand 1, single buffered']
    #allocation6 [shape = 's32[1]{0}', space=sflag, size = 0x4, scoped, tag = 'scoped memory for tpu_custom_call.1']
    #allocation7 [shape = 'u8[65536]{0}', space=vmem, size = 0x10000, scoped, tag = 'input window, operand 3, single buffered']
    #allocation8 [shape = 'u8[32768]{0}', space=vmem, size = 0x8000, scoped, tag = 'input window, operand 5, single buffered']
    #allocation9 [shape = 's32[1]{0}', space=sflag, size = 0x4, scoped, tag = 'scoped memory for tpu_custom_call.1']
    #allocation10 [shape = 'u8[32768]{0}', space=vmem, size = 0x8000, scoped, tag = 'input window, operand 7, single buffered']
    #allocation11 [shape = 'u8[32768]{0}', space=vmem, size = 0x8000, scoped, tag = 'input window, operand 9, single buffered']
    #allocation12 [shape = 's32[1]{0}', space=sflag, size = 0x4, scoped, tag = 'scoped memory for tpu_custom_call.1']
    #allocation13 [shape = 'u8[4096]{0}', space=vmem, size = 0x1000, scoped, tag = 'output window, operand 0, single buffered']
    %16 = vsyncpa [#allocation3], 0
    %17 = vsyncpa [#allocation6], 0
    %18 = vsyncpa [#allocation9], 0
    %19 = vsyncpa [#allocation12], 0
    %20 = vsyncpa [#allocation4], 0
    // Predicated region
    $region2: #{tpu_custom_call.1} parent=1 // pred_check
      _
    $region3: #{tpu_custom_call.1} parent=1 // pred_check_branch
      %22 = sbr.rel (0) target = $region5
    $region4: #{tpu_custom_call.1} parent=1 // pred_region
      %s24 = ssub.s32 64, 64
      %25 = vsyncadd [#allocation3], %s24
      %s27 = sshll.u32 [#allocation2], 4
      %s28 = int_to_ptr.vmem [resolvable:$true] %s27
      %30 = dma.hbm_to_vmem [thread:$0]  %s0, 64, %s28, [#allocation3]
    $region5: #{tpu_custom_call.1} parent=1 // pred_fallthru
      _
    // Predicated region
    $region6: #{tpu_custom_call.1} parent=1 // pred_check
      _
    $region7: #{tpu_custom_call.1} parent=1 // pred_check_branch
      %32 = sbr.rel (0) target = $region9
    $region8: #{tpu_custom_call.1} parent=1 // pred_region
      %s34 = ssub.s32 128, 128
      %35 = vsyncadd [#allocation6], %s34
      %s37 = sshll.u32 [#allocation5], 4
      %s38 = int_to_ptr.vmem [resolvable:$true] %s37
      %40 = dma.hbm_to_vmem [thread:$0]  %s1, 128, %s38, [#allocation6]
    $region9: #{tpu_custom_call.1} parent=1 // pred_fallthru
      _
    // Predicated region
    $region10: #{tpu_custom_call.1} parent=1 // pred_check
      _
    $region11: #{tpu_custom_call.1} parent=1 // pred_check_branch
      %42 = sbr.rel (0) target = $region13
    $region12: #{tpu_custom_call.1} parent=1 // pred_region
      _
    $region13: #{tpu_custom_call.1} parent=1 // pred_fallthru
      _
    // Predicated region
    $region14: #{tpu_custom_call.1} parent=1 // pred_check
      _
    $region15: #{tpu_custom_call.1} parent=1 // pred_check_branch
      %44 = sbr.rel (0) target = $region17
    $region16: #{tpu_custom_call.1} parent=1 // pred_region
      %s46 = ssub.s32 2048, 2048
      %47 = vsyncadd [#allocation6], %s46
      %s48 = sshll.u32 [#allocation7], 4
      %s49 = int_to_ptr.vmem [resolvable:$true] %s48
      %54 = dma.hbm_to_vmem [thread:$0]  %s3, 2048, %s49, [#allocation6], 64, 64, 4
    $region17: #{tpu_custom_call.1} parent=1 // pred_fallthru
      _
    // Predicated region
    $region18: #{tpu_custom_call.1} parent=1 // pred_check
      _
    $region19: #{tpu_custom_call.1} parent=1 // pred_check_branch
      %56 = sbr.rel (0) target = $region21
    $region20: #{tpu_custom_call.1} parent=1 // pred_region
      _
    $region21: #{tpu_custom_call.1} parent=1 // pred_fallthru
      _
    // Predicated region
    $region22: #{tpu_custom_call.1} parent=1 // pred_check
      _
    $region23: #{tpu_custom_call.1} parent=1 // pred_check_branch
      %58 = sbr.rel (0) target = $region25
    $region24: #{tpu_custom_call.1} parent=1 // pred_region
      %s60 = ssub.s32 1024, 1024
      %61 = vsyncadd [#allocation9], %s60
      %s62 = sshll.u32 [#allocation8], 4
      %s63 = int_to_ptr.vmem [resolvable:$true] %s62
      %68 = dma.hbm_to_vmem [thread:$0]  %s5, 1024, %s63, [#allocation9], 64, 64, 4
    $region25: #{tpu_custom_call.1} parent=1 // pred_fallthru
      _
    // Predicated region
    $region26: #{tpu_custom_call.1} parent=1 // pred_check
      _
    $region27: #{tpu_custom_call.1} parent=1 // pred_check_branch
      %70 = sbr.rel (0) target = $region29
    $region28: #{tpu_custom_call.1} parent=1 // pred_region
      _
    $region29: #{tpu_custom_call.1} parent=1 // pred_fallthru
      _
    // Predicated region
    $region30: #{tpu_custom_call.1} parent=1 // pred_check
      _
    $region31: #{tpu_custom_call.1} parent=1 // pred_check_branch
      %72 = sbr.rel (0) target = $region33
    $region32: #{tpu_custom_call.1} parent=1 // pred_region
      %s74 = ssub.s32 1024, 1024
      %75 = vsyncadd [#allocation9], %s74
      %s76 = sshll.u32 [#allocation10], 4
      %s77 = int_to_ptr.vmem [resolvable:$true] %s76
      %82 = dma.hbm_to_vmem [thread:$0]  %s7, 1024, %s77, [#allocation9], 64, 64, 4
    $region33: #{tpu_custom_call.1} parent=1 // pred_fallthru
      _
    // Predicated region
    $region34: #{tpu_custom_call.1} parent=1 // pred_check
      _
    $region35: #{tpu_custom_call.1} parent=1 // pred_check_branch
      %84 = sbr.rel (0) target = $region37
    $region36: #{tpu_custom_call.1} parent=1 // pred_region
      _
    $region37: #{tpu_custom_call.1} parent=1 // pred_fallthru
      _
    // Predicated region
    $region38: #{tpu_custom_call.1} parent=1 // pred_check
      _
    $region39: #{tpu_custom_call.1} parent=1 // pred_check_branch
      %86 = sbr.rel (0) target = $region41
    $region40: #{tpu_custom_call.1} parent=1 // pred_region
      %s88 = ssub.s32 1024, 1024
      %89 = vsyncadd [#allocation12], %s88
      %s90 = sshll.u32 [#allocation11], 4
      %s91 = int_to_ptr.vmem [resolvable:$true] %s90
      %96 = dma.hbm_to_vmem [thread:$0]  %s9, 1024, %s91, [#allocation12], 64, 64, 4
    $region41: #{tpu_custom_call.1} parent=1 // pred_fallthru
      _
    // Predicated region
    $region42: #{tpu_custom_call.1} parent=1 // pred_check
      _
    $region43: #{tpu_custom_call.1} parent=1 // pred_check_branch
      %98 = sbr.rel (0) target = $region45
    $region44: #{tpu_custom_call.1} parent=1 // pred_region
      _
    $region45: #{tpu_custom_call.1} parent=1 // pred_fallthru
      _
    // Predicated region
    $region46: #{tpu_custom_call.1} parent=1 // pred_check
      _
    $region47: #{tpu_custom_call.1} parent=1 // pred_check_branch
      %100 = sbr.rel (0) target = $region49
    $region48: #{tpu_custom_call.1} parent=1 // pred_region
      %101 = dma.done [#allocation3], 64
    $region49: #{tpu_custom_call.1} parent=1 // pred_fallthru
      _
    // Predicated region
    $region50: #{tpu_custom_call.1} parent=1 // pred_check
      _
    $region51: #{tpu_custom_call.1} parent=1 // pred_check_branch
      %103 = sbr.rel (0) target = $region53
    $region52: #{tpu_custom_call.1} parent=1 // pred_region
      %104 = dma.done [#allocation6], 128
    $region53: #{tpu_custom_call.1} parent=1 // pred_fallthru
      _
    // Predicated region
    $region54: #{tpu_custom_call.1} parent=1 // pred_check
      _
    $region55: #{tpu_custom_call.1} parent=1 // pred_check_branch
      %106 = sbr.rel (0) target = $region57
    $region56: #{tpu_custom_call.1} parent=1 // pred_region
      %107 = dma.done [#allocation6], 2048
    $region57: #{tpu_custom_call.1} parent=1 // pred_fallthru
      _
    // Predicated region
    $region58: #{tpu_custom_call.1} parent=1 // pred_check
      _
    $region59: #{tpu_custom_call.1} parent=1 // pred_check_branch
      %109 = sbr.rel (0) target = $region61
    $region60: #{tpu_custom_call.1} parent=1 // pred_region
      %110 = dma.done [#allocation9], 1024
    $region61: #{tpu_custom_call.1} parent=1 // pred_fallthru
      _
    // Predicated region
    $region62: #{tpu_custom_call.1} parent=1 // pred_check
      _
    $region63: #{tpu_custom_call.1} parent=1 // pred_check_branch
      %112 = sbr.rel (0) target = $region65
    $region64: #{tpu_custom_call.1} parent=1 // pred_region
      %113 = dma.done [#allocation9], 1024
    $region65: #{tpu_custom_call.1} parent=1 // pred_fallthru
      _
    // Predicated region
    $region66: #{tpu_custom_call.1} parent=1 // pred_check
      _
    $region67: #{tpu_custom_call.1} parent=1 // pred_check_branch
      %115 = sbr.rel (0) target = $region69
    $region68: #{tpu_custom_call.1} parent=1 // pred_region
      %116 = dma.done [#allocation12], 1024
    $region69: #{tpu_custom_call.1} parent=1 // pred_fallthru
      _
    %v118 = vld [vmem:[#allocation2] sm:$0xf]
    %v119 = vld [vmem:[#allocation5] sm:$0xff]
    %v120 = vld [vmem:[%s2] sm:$0x3]
    %v122 = vlaneseq
    %v123 = vshrl.u32 %v122, 7
    %v124 = vsub.s32 0, %v123
    %v125 = vrot.slane %v120, %v124
    %v126 = vlaneseq
    %v127 = vshrl.u32 %v126, 7
    %v128 = vsub.s32 1, %v127
    %v129 = vrot.slane %v120, %v128
    %v133 = vunpack.c.l.b16 %v119
    %v134 = vunpack.c.h.b16 %v119
    %v135 = vpack.c.b16 %v133, %v133
    %v136 = vpack.c.b16 %v134, %v134
    %vm137 = vcmask 64512
    %v139 = vsel %vm137, %v118, 0
    %vm141 = vcmask 1043456
    %v143 = vsel %vm141, %v135, 0
    %v146 = vsel %vm141, %v136, 0
    %148 = vmatprep.subr.bf16.mxu0 0
    %149 = vmatpush1.bf16.msra.mxu0 0
    %150 = vmatprep.subr.bf16.mxu0 0
    %151 = vmatpush1.bf16.msra.mxu0 0
    %152 = vmatprep.subr.bf16.mxu0 0
    %153 = vmatpush1.bf16.msra.mxu0 0
    %154 = vmatprep.subr.bf16.mxu0 0
    %155 = vmatpush1.bf16.msra.mxu0 0
    %156 = vmatprep.subr.bf16.mxu0 0
    %157 = vmatpush1.bf16.msra.mxu0 0
    %158 = vmatprep.subr.bf16.mxu0 0
    %159 = vmatpush1.bf16.msra.mxu0 0
    %160 = vmatprep.subr.bf16.mxu0 0
    %161 = vmatpush1.bf16.msra.mxu0 0
    %162 = vmatprep.subr.bf16.mxu0 %v146
    %163 = vmatpush1.bf16.msra.mxu0 %v143
    %164 = vmatprep.subr.bf16.mxu0 0
    %165 = vmatpush2.bf16.msra.mxu0 0
    %166 = vmatprep.subr.bf16.mxu0 0
    %167 = vmatpush2.bf16.msra.mxu0 0
    %168 = vmatprep.subr.bf16.mxu0 0
    %169 = vmatpush2.bf16.msra.mxu0 0
    %170 = vmatprep.subr.bf16.mxu0 0
    %171 = vmatpush2.bf16.msra.mxu0 0
    %172 = vmatprep.subr.bf16.mxu0 0
    %173 = vmatpush2.bf16.msra.mxu0 0
    %174 = vmatprep.subr.bf16.mxu0 0
    %175 = vmatpush2.bf16.msra.mxu0 0
    %176 = vmatprep.subr.bf16.mxu0 0
    %177 = vmatpush2.bf16.msra.mxu0 0
    %178 = vmatprep.subr.bf16.mxu0 0
    %179 = vmatpush2.bf16.msra.mxu0 0
    %180 = vmatprep.mubr.bf16.mxu0 0
    %181 = vmatmul.mubr.bf16.gmra.mxu0 %v139
    %v182 = vpop.f32.mrf.mxu0
    %v183 = vadd.f32 %v125, %v182
    %v184 = vpop.f32.mrf.mxu0
    %v185 = vadd.f32 %v129, %v184
    %v186 = vpop.f32.mrf.mxu0
    %v187 = vpop.f32.mrf.mxu0
    %188 = vdwg.mxu0
    %v189 = vtanh.pop %v183
    %v190 = vtanh.pop %v185
    %v191 = vpack.c.bf16 %v189, %v189
    %v192 = vpack.c.bf16 %v190, %v190
    %v193 = vld [vmem:[#allocation7] sm:$0xf]
    %v194 = vld [vmem:[#allocation7 + $0x4] sm:$0xf]
    %v195 = vld [vmem:[#allocation7 + $0x8] sm:$0xf]
    %v196 = vld [vmem:[#allocation7 + $0xc] sm:$0xf]
    %v197 = vld [vmem:[#allocation7 + $0x10] sm:$0xf]
    %v198 = vld [vmem:[#allocation7 + $0x14] sm:$0xf]
    %v199 = vld [vmem:[#allocation7 + $0x18] sm:$0xf]
    %v200 = vld [vmem:[#allocation7 + $0x1c] sm:$0xf]
    %v201 = vld [vmem:[#allocation7 + $0x20] sm:$0xf]
    %v202 = vld [vmem:[#allocation7 + $0x24] sm:$0xf]
    %v203 = vld [vmem:[#allocation7 + $0x28] sm:$0xf]
    %v204 = vld [vmem:[#allocation7 + $0x2c] sm:$0xf]
    %v205 = vld [vmem:[#allocation7 + $0x30] sm:$0xf]
    %v206 = vld [vmem:[#allocation7 + $0x34] sm:$0xf]
    %v207 = vld [vmem:[#allocation7 + $0x38] sm:$0xf]
    %v208 = vld [vmem:[#allocation7 + $0x3c] sm:$0xf]
    %v209 = vld [vmem:[#allocation7 + $0x40] sm:$0xf]
    %v210 = vld [vmem:[#allocation7 + $0x44] sm:$0xf]
    %v211 = vld [vmem:[#allocation7 + $0x48] sm:$0xf]
    %v212 = vld [vmem:[#allocation7 + $0x4c] sm:$0xf]
    %v213 = vld [vmem:[#allocation7 + $0x50] sm:$0xf]
    %v214 = vld [vmem:[#allocation7 + $0x54] sm:$0xf]
    %v215 = vld [vmem:[#allocation7 + $0x58] sm:$0xf]
    %v216 = vld [vmem:[#allocation7 + $0x5c] sm:$0xf]
    %v217 = vld [vmem:[#allocation7 + $0x60] sm:$0xf]
    %v218 = vld [vmem:[#allocation7 + $0x64] sm:$0xf]
    %v219 = vld [vmem:[#allocation7 + $0x68] sm:$0xf]
    %v220 = vld [vmem:[#allocation7 + $0x6c] sm:$0xf]
    %v221 = vld [vmem:[#allocation7 + $0x70] sm:$0xf]
    %v222 = vld [vmem:[#allocation7 + $0x74] sm:$0xf]
    %v223 = vld [vmem:[#allocation7 + $0x78] sm:$0xf]
    %v224 = vld [vmem:[#allocation7 + $0x7c] sm:$0xf]
    %v225 = vld [vmem:[%s4] sm:$0x1]
    %v227 = vlaneseq
    %v228 = vshrl.u32 %v227, 7
    %v229 = vsub.s32 0, %v228
    %v230 = vrot.slane %v225, %v229
    %v264 = vunpack.c.l.b16 %v193
    %v265 = vunpack.c.l.b16 %v194
    %v266 = vunpack.c.l.b16 %v195
    %v267 = vunpack.c.l.b16 %v196
    %v268 = vunpack.c.l.b16 %v197
    %v269 = vunpack.c.l.b16 %v198
    %v270 = vunpack.c.l.b16 %v199
    %v271 = vunpack.c.l.b16 %v200
    %v272 = vunpack.c.l.b16 %v201
    %v273 = vunpack.c.l.b16 %v202
    %v274 = vunpack.c.l.b16 %v203
    %v275 = vunpack.c.l.b16 %v204
    %v276 = vunpack.c.l.b16 %v205
    %v277 = vunpack.c.l.b16 %v206
    %v278 = vunpack.c.l.b16 %v207
    %v279 = vunpack.c.l.b16 %v208
    %v280 = vunpack.c.l.b16 %v209
    %v281 = vunpack.c.l.b16 %v210
    %v282 = vunpack.c.l.b16 %v211
    %v283 = vunpack.c.l.b16 %v212
    %v284 = vunpack.c.l.b16 %v213
    %v285 = vunpack.c.l.b16 %v214
    %v286 = vunpack.c.l.b16 %v215
    %v287 = vunpack.c.l.b16 %v216
    %v288 = vunpack.c.l.b16 %v217
    %v289 = vunpack.c.l.b16 %v218
    %v290 = vunpack.c.l.b16 %v219
    %v291 = vunpack.c.l.b16 %v220
    %v292 = vunpack.c.l.b16 %v221
    %v293 = vunpack.c.l.b16 %v222
    %v294 = vunpack.c.l.b16 %v223
    %v295 = vunpack.c.l.b16 %v224
    %v296 = vpack.c.b16 %v265, %v264
    %v297 = vpack.c.b16 %v267, %v266
    %v298 = vpack.c.b16 %v269, %v268
    %v299 = vpack.c.b16 %v271, %v270
    %v300 = vpack.c.b16 %v273, %v272
    %v301 = vpack.c.b16 %v275, %v274
    %v302 = vpack.c.b16 %v277, %v276
    %v303 = vpack.c.b16 %v279, %v278
    %v304 = vpack.c.b16 %v281, %v280
    %v305 = vpack.c.b16 %v283, %v282
    %v306 = vpack.c.b16 %v285, %v284
    %v307 = vpack.c.b16 %v287, %v286
    %v308 = vpack.c.b16 %v289, %v288
    %v309 = vpack.c.b16 %v291, %v290
    %v310 = vpack.c.b16 %v293, %v292
    %v311 = vpack.c.b16 %v295, %v294
    %328 = vmatprep.subr.bf16.mxu0 0
    %329 = vmatpush1.bf16.msra.mxu0 %v303
    %330 = vmatprep.subr.bf16.mxu0 0
    %331 = vmatpush1.bf16.msra.mxu0 %v302
    %332 = vmatprep.subr.bf16.mxu0 0
    %333 = vmatpush1.bf16.msra.mxu0 %v301
    %334 = vmatprep.subr.bf16.mxu0 0
    %335 = vmatpush1.bf16.msra.mxu0 %v300
    %336 = vmatprep.subr.bf16.mxu0 0
    %337 = vmatpush1.bf16.msra.mxu0 %v299
    %338 = vmatprep.subr.bf16.mxu0 0
    %339 = vmatpush1.bf16.msra.mxu0 %v298
    %340 = vmatprep.subr.bf16.mxu0 0
    %341 = vmatpush1.bf16.msra.mxu0 %v297
    %342 = vmatprep.subr.bf16.mxu0 0
    %343 = vmatpush1.bf16.msra.mxu0 %v296
    %344 = vmatprep.subr.bf16.mxu0 0
    %345 = vmatpush2.bf16.msra.mxu0 %v311
    %346 = vmatprep.subr.bf16.mxu0 0
    %347 = vmatpush2.bf16.msra.mxu0 %v310
    %348 = vmatprep.subr.bf16.mxu0 0
    %349 = vmatpush2.bf16.msra.mxu0 %v309
    %350 = vmatprep.subr.bf16.mxu0 0
    %351 = vmatpush2.bf16.msra.mxu0 %v308
    %352 = vmatprep.subr.bf16.mxu0 0
    %353 = vmatpush2.bf16.msra.mxu0 %v307
    %354 = vmatprep.subr.bf16.mxu0 0
    %355 = vmatpush2.bf16.msra.mxu0 %v306
    %356 = vmatprep.subr.bf16.mxu0 0
    %357 = vmatpush2.bf16.msra.mxu0 %v305
    %358 = vmatprep.subr.bf16.mxu0 0
    %359 = vmatpush2.bf16.msra.mxu0 %v304
    %360 = vmatprep.mubr.bf16.mxu0 %v192
    %361 = vmatmul.mubr.bf16.gmra.mxu0 %v191
    %v362 = vpop.f32.mrf.mxu0
    %v363 = vadd.f32 %v230, %v362
    %v364 = vpop.f32.mrf.mxu0
    %v365 = vpop.f32.mrf.mxu0
    %v366 = vpop.f32.mrf.mxu0
    %367 = vdwg.mxu0
    %v368 = vtanh.pop %v363
    %v369 = vpack.c.bf16 %v368, %v368
    %v370 = vld [vmem:[#allocation8] sm:$0xf]
    %v371 = vld [vmem:[#allocation8 + $0x4] sm:$0xf]
    %v372 = vld [vmem:[#allocation8 + $0x8] sm:$0xf]
    %v373 = vld [vmem:[#allocation8 + $0xc] sm:$0xf]
    %v374 = vld [vmem:[#allocation8 + $0x10] sm:$0xf]
    %v375 = vld [vmem:[#allocation8 + $0x14] sm:$0xf]
    %v376 = vld [vmem:[#allocation8 + $0x18] sm:$0xf]
    %v377 = vld [vmem:[#allocation8 + $0x1c] sm:$0xf]
    %v378 = vld [vmem:[#allocation8 + $0x20] sm:$0xf]
    %v379 = vld [vmem:[#allocation8 + $0x24] sm:$0xf]
    %v380 = vld [vmem:[#allocation8 + $0x28] sm:$0xf]
    %v381 = vld [vmem:[#allocation8 + $0x2c] sm:$0xf]
    %v382 = vld [vmem:[#allocation8 + $0x30] sm:$0xf]
    %v383 = vld [vmem:[#allocation8 + $0x34] sm:$0xf]
    %v384 = vld [vmem:[#allocation8 + $0x38] sm:$0xf]
    %v385 = vld [vmem:[#allocation8 + $0x3c] sm:$0xf]
    %v386 = vld [vmem:[%s6] sm:$0x1]
    %v388 = vlaneseq
    %v389 = vshrl.u32 %v388, 7
    %v390 = vsub.s32 0, %v389
    %v391 = vrot.slane %v386, %v390
    %v409 = vunpack.c.l.b16 %v370
    %v410 = vunpack.c.l.b16 %v371
    %v411 = vunpack.c.l.b16 %v372
    %v412 = vunpack.c.l.b16 %v373
    %v413 = vunpack.c.l.b16 %v374
    %v414 = vunpack.c.l.b16 %v375
    %v415 = vunpack.c.l.b16 %v376
    %v416 = vunpack.c.l.b16 %v377
    %v417 = vunpack.c.l.b16 %v378
    %v418 = vunpack.c.l.b16 %v379
    %v419 = vunpack.c.l.b16 %v380
    %v420 = vunpack.c.l.b16 %v381
    %v421 = vunpack.c.l.b16 %v382
    %v422 = vunpack.c.l.b16 %v383
    %v423 = vunpack.c.l.b16 %v384
    %v424 = vunpack.c.l.b16 %v385
    %v425 = vpack.c.b16 %v410, %v409
    %v426 = vpack.c.b16 %v412, %v411
    %v427 = vpack.c.b16 %v414, %v413
    %v428 = vpack.c.b16 %v416, %v415
    %v429 = vpack.c.b16 %v418, %v417
    %v430 = vpack.c.b16 %v420, %v419
    %v431 = vpack.c.b16 %v422, %v421
    %v432 = vpack.c.b16 %v424, %v423
    %441 = vmatprep.subr.bf16.mxu0 0
    %442 = vmatpush1.bf16.msra.mxu0 %v432
    %443 = vmatprep.subr.bf16.mxu0 0
    %444 = vmatpush1.bf16.msra.mxu0 %v431
    %445 = vmatprep.subr.bf16.mxu0 0
    %446 = vmatpush1.bf16.msra.mxu0 %v430
    %447 = vmatprep.subr.bf16.mxu0 0
    %448 = vmatpush1.bf16.msra.mxu0 %v429
    %449 = vmatprep.subr.bf16.mxu0 0
    %450 = vmatpush1.bf16.msra.mxu0 %v428
    %451 = vmatprep.subr.bf16.mxu0 0
    %452 = vmatpush1.bf16.msra.mxu0 %v427
    %453 = vmatprep.subr.bf16.mxu0 0
    %454 = vmatpush1.bf16.msra.mxu0 %v426
    %455 = vmatprep.subr.bf16.mxu0 0
    %456 = vmatpush1.bf16.msra.mxu0 %v425
    %457 = vmatprep.subr.bf16.mxu0 0
    %458 = vmatpush2.bf16.msra.mxu0 0
    %459 = vmatprep.subr.bf16.mxu0 0
    %460 = vmatpush2.bf16.msra.mxu0 0
    %461 = vmatprep.subr.bf16.mxu0 0
    %462 = vmatpush2.bf16.msra.mxu0 0
    %463 = vmatprep.subr.bf16.mxu0 0
    %464 = vmatpush2.bf16.msra.mxu0 0
    %465 = vmatprep.subr.bf16.mxu0 0
    %466 = vmatpush2.bf16.msra.mxu0 0
    %467 = vmatprep.subr.bf16.mxu0 0
    %468 = vmatpush2.bf16.msra.mxu0 0
    %469 = vmatprep.subr.bf16.mxu0 0
    %470 = vmatpush2.bf16.msra.mxu0 0
    %471 = vmatprep.subr.bf16.mxu0 0
    %472 = vmatpush2.bf16.msra.mxu0 0
    %473 = vmatprep.mubr.bf16.mxu0 0
    %474 = vmatmul.mubr.bf16.gmra.mxu0 %v369
    %v475 = vpop.f32.mrf.mxu0
    %v476 = vadd.f32 %v391, %v475
    %v477 = vpop.f32.mrf.mxu0
    %v478 = vpop.f32.mrf.mxu0
    %v479 = vpop.f32.mrf.mxu0
    %480 = vdwg.mxu0
    %v481 = vtanh.pop %v476
    %v482 = vpack.c.bf16 %v481, %v481
    %v483 = vld [vmem:[#allocation10] sm:$0xf]
    %v484 = vld [vmem:[#allocation10 + $0x4] sm:$0xf]
    %v485 = vld [vmem:[#allocation10 + $0x8] sm:$0xf]
    %v486 = vld [vmem:[#allocation10 + $0xc] sm:$0xf]
    %v487 = vld [vmem:[#allocation10 + $0x10] sm:$0xf]
    %v488 = vld [vmem:[#allocation10 + $0x14] sm:$0xf]
    %v489 = vld [vmem:[#allocation10 + $0x18] sm:$0xf]
    %v490 = vld [vmem:[#allocation10 + $0x1c] sm:$0xf]
    %v491 = vld [vmem:[#allocation10 + $0x20] sm:$0xf]
    %v492 = vld [vmem:[#allocation10 + $0x24] sm:$0xf]
    %v493 = vld [vmem:[#allocation10 + $0x28] sm:$0xf]
    %v494 = vld [vmem:[#allocation10 + $0x2c] sm:$0xf]
    %v495 = vld [vmem:[#allocation10 + $0x30] sm:$0xf]
    %v496 = vld [vmem:[#allocation10 + $0x34] sm:$0xf]
    %v497 = vld [vmem:[#allocation10 + $0x38] sm:$0xf]
    %v498 = vld [vmem:[#allocation10 + $0x3c] sm:$0xf]
    %v499 = vld [vmem:[%s8] sm:$0x1]
    %v501 = vlaneseq
    %v502 = vshrl.u32 %v501, 7
    %v503 = vsub.s32 0, %v502
    %v504 = vrot.slane %v499, %v503
    %v522 = vunpack.c.l.b16 %v483
    %v523 = vunpack.c.l.b16 %v484
    %v524 = vunpack.c.l.b16 %v485
    %v525 = vunpack.c.l.b16 %v486
    %v526 = vunpack.c.l.b16 %v487
    %v527 = vunpack.c.l.b16 %v488
    %v528 = vunpack.c.l.b16 %v489
    %v529 = vunpack.c.l.b16 %v490
    %v530 = vunpack.c.l.b16 %v491
    %v531 = vunpack.c.l.b16 %v492
    %v532 = vunpack.c.l.b16 %v493
    %v533 = vunpack.c.l.b16 %v494
    %v534 = vunpack.c.l.b16 %v495
    %v535 = vunpack.c.l.b16 %v496
    %v536 = vunpack.c.l.b16 %v497
    %v537 = vunpack.c.l.b16 %v498
    %v538 = vpack.c.b16 %v523, %v522
    %v539 = vpack.c.b16 %v525, %v524
    %v540 = vpack.c.b16 %v527, %v526
    %v541 = vpack.c.b16 %v529, %v528
    %v542 = vpack.c.b16 %v531, %v530
    %v543 = vpack.c.b16 %v533, %v532
    %v544 = vpack.c.b16 %v535, %v534
    %v545 = vpack.c.b16 %v537, %v536
    %554 = vmatprep.subr.bf16.mxu0 0
    %555 = vmatpush1.bf16.msra.mxu0 %v545
    %556 = vmatprep.subr.bf16.mxu0 0
    %557 = vmatpush1.bf16.msra.mxu0 %v544
    %558 = vmatprep.subr.bf16.mxu0 0
    %559 = vmatpush1.bf16.msra.mxu0 %v543
    %560 = vmatprep.subr.bf16.mxu0 0
    %561 = vmatpush1.bf16.msra.mxu0 %v542
    %562 = vmatprep.subr.bf16.mxu0 0
    %563 = vmatpush1.bf16.msra.mxu0 %v541
    %564 = vmatprep.subr.bf16.mxu0 0
    %565 = vmatpush1.bf16.msra.mxu0 %v540
    %566 = vmatprep.subr.bf16.mxu0 0
    %567 = vmatpush1.bf16.msra.mxu0 %v539
    %568 = vmatprep.subr.bf16.mxu0 0
    %569 = vmatpush1.bf16.msra.mxu0 %v538
    %570 = vmatprep.subr.bf16.mxu0 0
    %571 = vmatpush2.bf16.msra.mxu0 0
    %572 = vmatprep.subr.bf16.mxu0 0
    %573 = vmatpush2.bf16.msra.mxu0 0
    %574 = vmatprep.subr.bf16.mxu0 0
    %575 = vmatpush2.bf16.msra.mxu0 0
    %576 = vmatprep.subr.bf16.mxu0 0
    %577 = vmatpush2.bf16.msra.mxu0 0
    %578 = vmatprep.subr.bf16.mxu0 0
    %579 = vmatpush2.bf16.msra.mxu0 0
    %580 = vmatprep.subr.bf16.mxu0 0
    %581 = vmatpush2.bf16.msra.mxu0 0
    %582 = vmatprep.subr.bf16.mxu0 0
    %583 = vmatpush2.bf16.msra.mxu0 0
    %584 = vmatprep.subr.bf16.mxu0 0
    %585 = vmatpush2.bf16.msra.mxu0 0
    %586 = vmatprep.mubr.bf16.mxu0 0
    %587 = vmatmul.mubr.bf16.gmra.mxu0 %v482
    %v588 = vpop.f32.mrf.mxu0
    %v589 = vadd.f32 %v504, %v588
    %v590 = vpop.f32.mrf.mxu0
    %v591 = vpop.f32.mrf.mxu0
    %v592 = vpop.f32.mrf.mxu0
    %593 = vdwg.mxu0
    %v594 = vtanh.pop %v589
    %v595 = vpack.c.bf16 %v594, %v594
    %v596 = vld [vmem:[#allocation11] sm:$0xf]
    %v597 = vld [vmem:[#allocation11 + $0x4] sm:$0xf]
    %v598 = vld [vmem:[#allocation11 + $0x8] sm:$0xf]
    %v599 = vld [vmem:[#allocation11 + $0xc] sm:$0xf]
    %v600 = vld [vmem:[#allocation11 + $0x10] sm:$0xf]
    %v601 = vld [vmem:[#allocation11 + $0x14] sm:$0xf]
    %v602 = vld [vmem:[#allocation11 + $0x18] sm:$0xf]
    %v603 = vld [vmem:[#allocation11 + $0x1c] sm:$0xf]
    %v604 = vld [vmem:[#allocation11 + $0x20] sm:$0xf]
    %v605 = vld [vmem:[#allocation11 + $0x24] sm:$0xf]
    %v606 = vld [vmem:[#allocation11 + $0x28] sm:$0xf]
    %v607 = vld [vmem:[#allocation11 + $0x2c] sm:$0xf]
    %v608 = vld [vmem:[#allocation11 + $0x30] sm:$0xf]
    %v609 = vld [vmem:[#allocation11 + $0x34] sm:$0xf]
    %v610 = vld [vmem:[#allocation11 + $0x38] sm:$0xf]
    %v611 = vld [vmem:[#allocation11 + $0x3c] sm:$0xf]
    %v612 = vld [vmem:[%s10] sm:$0x1]
    %v614 = vlaneseq
    %v615 = vshrl.u32 %v614, 7
    %v616 = vsub.s32 0, %v615
    %v617 = vrot.slane %v612, %v616
    %v635 = vunpack.c.l.b16 %v596
    %v636 = vunpack.c.l.b16 %v597
    %v637 = vunpack.c.l.b16 %v598
    %v638 = vunpack.c.l.b16 %v599
    %v639 = vunpack.c.l.b16 %v600
    %v640 = vunpack.c.l.b16 %v601
    %v641 = vunpack.c.l.b16 %v602
    %v642 = vunpack.c.l.b16 %v603
    %v643 = vunpack.c.l.b16 %v604
    %v644 = vunpack.c.l.b16 %v605
    %v645 = vunpack.c.l.b16 %v606
    %v646 = vunpack.c.l.b16 %v607
    %v647 = vunpack.c.l.b16 %v608
    %v648 = vunpack.c.l.b16 %v609
    %v649 = vunpack.c.l.b16 %v610
    %v650 = vunpack.c.l.b16 %v611
    %v651 = vpack.c.b16 %v636, %v635
    %v652 = vpack.c.b16 %v638, %v637
    %v653 = vpack.c.b16 %v640, %v639
    %v654 = vpack.c.b16 %v642, %v641
    %v655 = vpack.c.b16 %v644, %v643
    %v656 = vpack.c.b16 %v646, %v645
    %v657 = vpack.c.b16 %v648, %v647
    %v658 = vpack.c.b16 %v650, %v649
    %667 = vmatprep.subr.bf16.mxu0 0
    %668 = vmatpush1.bf16.msra.mxu0 %v658
    %669 = vmatprep.subr.bf16.mxu0 0
    %670 = vmatpush1.bf16.msra.mxu0 %v657
    %671 = vmatprep.subr.bf16.mxu0 0
    %672 = vmatpush1.bf16.msra.mxu0 %v656
    %673 = vmatprep.subr.bf16.mxu0 0
    %674 = vmatpush1.bf16.msra.mxu0 %v655
    %675 = vmatprep.subr.bf16.mxu0 0
    %676 = vmatpush1.bf16.msra.mxu0 %v654
    %677 = vmatprep.subr.bf16.mxu0 0
    %678 = vmatpush1.bf16.msra.mxu0 %v653
    %679 = vmatprep.subr.bf16.mxu0 0
    %680 = vmatpush1.bf16.msra.mxu0 %v652
    %681 = vmatprep.subr.bf16.mxu0 0
    %682 = vmatpush1.bf16.msra.mxu0 %v651
    %683 = vmatprep.subr.bf16.mxu0 0
    %684 = vmatpush2.bf16.msra.mxu0 0
    %685 = vmatprep.subr.bf16.mxu0 0
    %686 = vmatpush2.bf16.msra.mxu0 0
    %687 = vmatprep.subr.bf16.mxu0 0
    %688 = vmatpush2.bf16.msra.mxu0 0
    %689 = vmatprep.subr.bf16.mxu0 0
    %690 = vmatpush2.bf16.msra.mxu0 0
    %691 = vmatprep.subr.bf16.mxu0 0
    %692 = vmatpush2.bf16.msra.mxu0 0
    %693 = vmatprep.subr.bf16.mxu0 0
    %694 = vmatpush2.bf16.msra.mxu0 0
    %695 = vmatprep.subr.bf16.mxu0 0
    %696 = vmatpush2.bf16.msra.mxu0 0
    %697 = vmatprep.subr.bf16.mxu0 0
    %698 = vmatpush2.bf16.msra.mxu0 0
    %699 = vmatprep.mubr.bf16.mxu0 0
    %700 = vmatmul.mubr.bf16.gmra.mxu0 %v595
    %v701 = vpop.f32.mrf.mxu0
    %v702 = vadd.f32 %v617, %v701
    %v703 = vpop.f32.mrf.mxu0
    %v704 = vpop.f32.mrf.mxu0
    %v705 = vpop.f32.mrf.mxu0
    %706 = vdwg.mxu0
    %707 = vst [vmem:[#allocation13] sm:$0xff] %v702
    // Predicated region
    $region70: #{tpu_custom_call.1} parent=1 // pred_check
      _
    $region71: #{tpu_custom_call.1} parent=1 // pred_check_branch
      %709 = sbr.rel (0) target = $region73
    $region72: #{tpu_custom_call.1} parent=1 // pred_region
      %s711 = ssub.s32 128, 128
      %712 = vsyncadd [#allocation4], %s711
      %s714 = sshll.u32 [#allocation13], 4
      %s715 = int_to_ptr.vmem [resolvable:$true] %s714
      %717 = dma.vmem_to_hbm [thread:$0]  %s715, 128, %s11, [#allocation4]
    $region73: #{tpu_custom_call.1} parent=1 // pred_fallthru
      _
    // Predicated region
    $region74: #{tpu_custom_call.1} parent=1 // pred_check
      _
    $region75: #{tpu_custom_call.1} parent=1 // pred_check_branch
      %719 = sbr.rel (0) target = $region77
    $region76: #{tpu_custom_call.1} parent=1 // pred_region
      %720 = dma.done [#allocation4], 128
    $region77: #{tpu_custom_call.1} parent=1 // pred_fallthru
      _
    %721 = vsyncpa [#allocation3], 1
    %722 = vsyncpa [#allocation6], 1
    %723 = vsyncpa [#allocation9], 1
    %724 = vsyncpa [#allocation12], 1
    %725 = vsyncpa [#allocation4], 1

</llo_original>
